<compile_context>
chip_gen: v7x
topology: tpu7x:2x2x1
jax: 0.10.0
libtpu: 0.0.40
codegen_flags: <defaults>
</compile_context>

<pallas_src>
import jax
import jax.numpy as jnp
from jax.experimental import pallas as pl
from jax.experimental.pallas import tpu as pltpu


def _physionet_head_kernel(x_ref, w_ref, b_ref, o_ref):
    # x_ref: (tb, D) streamed batch tile; w_ref: (D, 2) resident; b_ref: (1, 2) f32;
    # o_ref: (tb, 2) output tile (last partial block is store-masked by Pallas).
    x = x_ref[...]
    y = jnp.dot(x, w_ref[...], preferred_element_type=jnp.float32)   # (tb, 2) f32 acc
    y = y + b_ref[...]
    # sigmoid(y) = 1 / (1 + exp(-y)); exp + reciprocal ride the EUP slot.
    sig = pl.reciprocal(1.0 + jnp.exp(-y), approx=False)
    col = jax.lax.broadcasted_iota(jnp.int32, y.shape, dimension=1)
    o_ref[...] = jnp.where(col == 1, sig, y).astype(o_ref.dtype)


def _choose_tb(B, D, in_itemsize, out_itemsize, vmem_budget_bytes=16 * 1024 * 1024):
    """Pick the batch tile size: VMEM-budgeted, multiple of 8, >= 2 grid steps."""
    if B <= 16:
        # Tiny batch: one full block (block_shape == full array dim is always legal).
        return B
    # Double-buffered streamed input + double-buffered lane-padded (128) output.
    per_row = 2 * D * in_itemsize + 2 * 128 * out_itemsize
    tb = int(vmem_budget_bytes // per_row)
    tb = max(8, (tb // 8) * 8)
    tb = min(tb, 8192)
    # Ensure >= 2 grid steps so dimension_semantics=("parallel",) can shard the batch
    # sweep across both TensorCores on v7x.
    half = -(-B // 2)            # ceil(B / 2)
    half = -(-half // 8) * 8     # round up to a multiple of 8
    return max(8, min(tb, half))


def physionet_head(x, weight, bias):
    """x: (B, d_model); weight: (2, d_model) (nn.Linear layout); bias: (2,).

    Returns (B, 2): [:, 0] = mortality logit, [:, 1] = sigmoid(risk logit).
    """
    B, D = x.shape
    N = weight.shape[0]                               # = 2

    w_t = weight.T.astype(x.dtype)                    # (D, N), resident in VMEM
    b2 = bias.reshape(1, N).astype(jnp.float32)       # (1, N), resident in VMEM

    in_itemsize = jnp.dtype(x.dtype).itemsize
    out_itemsize = in_itemsize
    tb = _choose_tb(B, D, in_itemsize, out_itemsize)
    grid = (pl.cdiv(B, tb),)                          # no padding; last block masked

    cost = pl.CostEstimate(
        flops=2 * B * D * N,
        transcendentals=2 * B,                        # exp over both output columns
        bytes_accessed=(B * D * in_itemsize           # streamed input (read once)
                        + D * N * jnp.dtype(w_t.dtype).itemsize
                        + N * 4                       # bias
                        + B * N * out_itemsize),      # output
    )

    return pl.pallas_call(
        _physionet_head_kernel,
        out_shape=jax.ShapeDtypeStruct((B, N), x.dtype),
        grid_spec=pl.GridSpec(
            grid=grid,
            in_specs=[
                pl.BlockSpec((tb, D), lambda i: (i, 0)),   # streamed batch tiles
                pl.BlockSpec((D, N), lambda i: (0, 0)),    # resident weight
                pl.BlockSpec((1, N), lambda i: (0, 0)),    # resident bias
            ],
            out_specs=pl.BlockSpec((tb, N), lambda i: (i, 0)),
        ),
        compiler_params=pltpu.CompilerParams(
            dimension_semantics=("parallel",),             # megacore-shard batch (v7x)
            vmem_limit_bytes=32 * 1024 * 1024,             # > v5e 16 MiB default scope
        ),
        cost_estimate=cost,
    )(x, w_t, b2)


def _reference(x, weight, bias):
    y = x @ weight.T + bias
    return jnp.stack([y[:, 0], jax.nn.sigmoid(y[:, 1])], axis=1)


if __name__ == "__main__":
    key = jax.random.PRNGKey(0)
    kx, kw, kb, kx2 = jax.random.split(key, 4)

    # Small shapes consistent with the module: x is (batch, d_model) -> (batch, 2).
    B, D = 2, 32
    N = 2  # fixed by the module: nn.Linear(d_model, 2)

    x = jax.random.normal(kx, (B, D), dtype=jnp.float32)

    # Deterministic nn.Linear-style init: U(-1/sqrt(d_model), 1/sqrt(d_model)).
    bound = 1.0 / (D ** 0.5)
    weight = jax.random.uniform(kw, (N, D), minval=-bound, maxval=bound,
                                dtype=jnp.float32)
    bias = jax.random.uniform(kb, (N,), minval=-bound, maxval=bound,
                              dtype=jnp.float32)

    out = jax.block_until_ready(physionet_head(x, weight, bias))
    ref = _reference(x, weight, bias)
    assert out.shape == (B, N)
    assert jnp.allclose(out, ref, atol=1e-5, rtol=1e-5), (
        f"mismatch: max abs err {jnp.max(jnp.abs(out - ref))}")

    # Also exercise the multi-step grid + masked partial last block (no padding path).
    B2 = 300
    x2 = jax.random.normal(kx2, (B2, D), dtype=jnp.float32)
    out2 = jax.block_until_ready(physionet_head(x2, weight, bias))
    ref2 = _reference(x2, weight, bias)
    assert out2.shape == (B2, N)
    assert jnp.allclose(out2, ref2, atol=1e-5, rtol=1e-5), (
        f"tiled mismatch: max abs err {jnp.max(jnp.abs(out2 - ref2))}")

    print("KERNEL_OK")
</pallas_src>

<mosaic_0001>
module attributes {stable_mosaic.version = 11 : i64} {
  func.func @_physionet_head_kernel(%arg0: i32, %arg1: memref<2x32xf32, #tpu.memory_space<vmem>>, %arg2: memref<32x2xf32, #tpu.memory_space<vmem>>, %arg3: memref<1x2xf32, #tpu.memory_space<vmem>>, %arg4: memref<2x2xf32, #tpu.memory_space<vmem>>) attributes {dimension_semantics = [#tpu.dimension_semantics<parallel>], iteration_bounds = array<i64: 1>, scalar_prefetch = 0 : i64, scratch_operands = 0 : i64, tpu.core_type = #tpu.core_type<tc>, window_params = [{transform_indices = @transform_0, window_bounds = array<i64: 2, 32>}, {pipeline_mode = #tpu.pipeline_mode<synchronous>, transform_indices = @transform_1, window_bounds = array<i64: 32, 2>}, {pipeline_mode = #tpu.pipeline_mode<synchronous>, transform_indices = @transform_2, window_bounds = array<i64: 1, 2>}, {transform_indices = @transform_3, window_bounds = array<i64: 2, 2>}]} {
    %c0 = arith.constant 0 : index
    %c0_0 = arith.constant 0 : index
    %0 = vector.load %arg1[%c0, %c0_0] : memref<2x32xf32, #tpu.memory_space<vmem>>, vector<2x32xf32>
    %c0_1 = arith.constant 0 : index
    %c0_2 = arith.constant 0 : index
    %1 = vector.load %arg2[%c0_1, %c0_2] : memref<32x2xf32, #tpu.memory_space<vmem>>, vector<32x2xf32>
    %cst = arith.constant dense<0.000000e+00> : vector<2x2xf32>
    %2 = tpu.matmul %0, %1, %cst {dimension_numbers = #tpu.dot_dimension_numbers<[1], [0], [0], [1], [0, 0, 1, 1], [], []>} : vector<2x32xf32>, vector<32x2xf32>, vector<2x2xf32> -> vector<2x2xf32>
    %c0_3 = arith.constant 0 : index
    %c0_4 = arith.constant 0 : index
    %3 = vector.load %arg3[%c0_3, %c0_4] : memref<1x2xf32, #tpu.memory_space<vmem>>, vector<1x2xf32>
    %4 = vector.broadcast %3 : vector<1x2xf32> to vector<2x2xf32>
    %5 = arith.addf %2, %4 : vector<2x2xf32>
    %cst_5 = arith.constant 0.000000e+00 : f32
    %6 = vector.broadcast %cst_5 : f32 to vector<2x2xf32>
    %7 = arith.subf %6, %5 : vector<2x2xf32>
    %8 = math.exp %7 : vector<2x2xf32>
    %cst_6 = arith.constant 1.000000e+00 : f32
    %9 = vector.broadcast %cst_6 : f32 to vector<2x2xf32>
    %10 = arith.addf %9, %8 : vector<2x2xf32>
    %11 = tpu.reciprocal %10 : vector<2x2xf32> -> vector<2x2xf32>
    %12 = tpu.iota {dimensions = array<i32: 1>} : vector<2x2xi32>
    %c1_i32 = arith.constant 1 : i32
    %13 = vector.broadcast %c1_i32 : i32 to vector<2x2xi32>
    %14 = arith.cmpi eq, %12, %13 : vector<2x2xi32>
    %15 = arith.select %14, %11, %5 : vector<2x2xi1>, vector<2x2xf32>
    %c0_7 = arith.constant 0 : index
    %c0_8 = arith.constant 0 : index
    %16 = vector.load %arg4[%c0_7, %c0_8] : memref<2x2xf32, #tpu.memory_space<vmem>>, vector<2x2xf32>
    tpu.vector_store %arg4[%c0_7, %c0_8], %15 {strides = array<i32>} : memref<2x2xf32, #tpu.memory_space<vmem>>, vector<2x2xf32>,
    return
  }
  func.func @transform_0(%arg0: i32) -> (i32, i32) {
    %c0_i32 = arith.constant 0 : i32
    %c0_i32_0 = arith.constant 0 : i32
    return %arg0, %c0_i32 : i32, i32
  }
  func.func @transform_1(%arg0: i32) -> (i32, i32) {
    %c0_i32 = arith.constant 0 : i32
    %c0_i32_0 = arith.constant 0 : i32
    %c0_i32_1 = arith.constant 0 : i32
    return %c0_i32, %c0_i32_0 : i32, i32
  }
  func.func @transform_2(%arg0: i32) -> (i32, i32) {
    %c0_i32 = arith.constant 0 : i32
    %c0_i32_0 = arith.constant 0 : i32
    %c0_i32_1 = arith.constant 0 : i32
    return %c0_i32, %c0_i32_0 : i32, i32
  }
  func.func @transform_3(%arg0: i32) -> (i32, i32) {
    %c0_i32 = arith.constant 0 : i32
    %c0_i32_0 = arith.constant 0 : i32
    return %arg0, %c0_i32 : i32, i32
  }
}

</mosaic_0001>

<llo_original>
// kernel: tpu_custom_call.1
$region0: #{tpu_custom_call.1}
  #allocation0 [shape = 'u32[]', space=smem, size = 0x4, offset = 0x4, fixed_abs, tag = 'smem constant byte address 0x4 - core index']
  #allocation1 [shape = 'u32[144,128]{1,0:T(1,128)}', space=vmem, size = 0x12000, scoped, tag = 'internal scratch']
  %s0 = inlined_call_operand.vmem [shape: f32[2,32], index: 0, kind: input, shape index: {}]
  %s1 = inlined_call_operand.vmem [shape: f32[32,2], index: 1, kind: input, shape index: {}]
  %s2 = inlined_call_operand.vmem [shape: f32[1,2], index: 2, kind: input, shape index: {}]
  %s3 = inlined_call_operand.hbm [shape: f32[2,2], index: 3, kind: output, shape index: {}]
  %s4 = sld [smem:[#allocation0]]
  $region22: #{tpu_custom_call.1} parent=0
    _
  %s6 = ssub.s32 1, %s4
  %s7 = scalar_select 0, %s6, %s4
  $region1: #{tpu_custom_call.1} parent=0
    #allocation2 [shape = 'u8[1024]{0}', space=vmem, size = 0x400, scoped, tag = 'output window, operand 0, single buffered']
    #allocation3 [shape = 's32[1]{0}', space=sflag, size = 0x4, scoped, tag = 'scoped memory for tpu_custom_call.1']
    %8 = vsyncpa [#allocation3], 0
    // Predicated region
    $region2: #{tpu_custom_call.1} parent=1 // pred_check
      _
    $region3: #{tpu_custom_call.1} parent=1 // pred_check_branch
      %10 = sbr.rel (0) target = $region5
    $region4: #{tpu_custom_call.1} parent=1 // pred_region
      _
    $region5: #{tpu_custom_call.1} parent=1 // pred_fallthru
      _
    // Predicated region
    $region6: #{tpu_custom_call.1} parent=1 // pred_check
      _
    $region7: #{tpu_custom_call.1} parent=1 // pred_check_branch
      %12 = sbr.rel (0) target = $region9
    $region8: #{tpu_custom_call.1} parent=1 // pred_region
      _
    $region9: #{tpu_custom_call.1} parent=1 // pred_fallthru
      _
    // Predicated region
    $region10: #{tpu_custom_call.1} parent=1 // pred_check
      _
    $region11: #{tpu_custom_call.1} parent=1 // pred_check_branch
      %14 = sbr.rel (0) target = $region13
    $region12: #{tpu_custom_call.1} parent=1 // pred_region
      _
    $region13: #{tpu_custom_call.1} parent=1 // pred_fallthru
      _
    %v15 = vld [vmem:[%s0] sm:$0x3]
    %v16 = vld [vmem:[%s1] sm:$0xff]
    %v17 = vld [vmem:[%s1 + $0x8] sm:$0xff]
    %v18 = vld [vmem:[%s1 + $0x10] sm:$0xff]
    %v19 = vld [vmem:[%s1 + $0x18] sm:$0xff]
    %v20 = vld [vmem:[%s2] sm:$0x1]
    %v22 = vlaneseq
    %v23 = vshrl.u32 %v22, 7
    %v24 = vsub.s32 0, %v23
    %v25 = vrot.slane %v20, %v24
    %vm27 = vcmask 261120
    %v29 = vsel %vm27, %v15, 0
    %31 = vmatprep.subr.mxu0 0.0
    %32 = vmatpush1.msra.mxu0 %v16
    %33 = vmatprep.subr.mxu0 0.0
    %34 = vmatpush1.msra.mxu0 %v17
    %35 = vmatprep.subr.mxu0 0.0
    %36 = vmatpush1.msra.mxu0 %v18
    %37 = vmatprep.subr.mxu0 0.0
    %38 = vmatpush1.msra.mxu0 %v19
    %39 = vmatprep.subr.mxu0 0.0
    %40 = vmatpush1.msra.mxu0 0.0
    %41 = vmatprep.subr.mxu0 0.0
    %42 = vmatpush1.msra.mxu0 0.0
    %43 = vmatprep.subr.mxu0 0.0
    %44 = vmatpush1.msra.mxu0 0.0
    %45 = vmatprep.subr.mxu0 0.0
    %46 = vmatpush1.msra.mxu0 0.0
    %47 = vmatprep.subr.mxu0 0.0
    %48 = vmatpush1.msra.mxu0 0.0
    %49 = vmatprep.subr.mxu0 0.0
    %50 = vmatpush1.msra.mxu0 0.0
    %51 = vmatprep.subr.mxu0 0.0
    %52 = vmatpush1.msra.mxu0 0.0
    %53 = vmatprep.subr.mxu0 0.0
    %54 = vmatpush1.msra.mxu0 0.0
    %55 = vmatprep.subr.mxu0 0.0
    %56 = vmatpush1.msra.mxu0 0.0
    %57 = vmatprep.subr.mxu0 0.0
    %58 = vmatpush1.msra.mxu0 0.0
    %59 = vmatprep.subr.mxu0 0.0
    %60 = vmatpush1.msra.mxu0 0.0
    %61 = vmatprep.subr.mxu0 0.0
    %62 = vmatpush1.msra.mxu0 0.0
    %63 = vmatprep.subr.mxu0 0.0
    %64 = vmatpush1.msra.mxu0 0.0
    %65 = vmatprep.subr.mxu0 0.0
    %66 = vmatpush1.msra.mxu0 0.0
    %67 = vmatprep.subr.mxu0 0.0
    %68 = vmatpush1.msra.mxu0 0.0
    %69 = vmatprep.subr.mxu0 0.0
    %70 = vmatpush1.msra.mxu0 0.0
    %71 = vmatprep.subr.mxu0 0.0
    %72 = vmatpush1.msra.mxu0 0.0
    %73 = vmatprep.subr.mxu0 0.0
    %74 = vmatpush1.msra.mxu0 0.0
    %75 = vmatprep.subr.mxu0 0.0
    %76 = vmatpush1.msra.mxu0 0.0
    %77 = vmatprep.subr.mxu0 0.0
    %78 = vmatpush1.msra.mxu0 0.0
    %79 = vmatprep.subr.mxu0 0.0
    %80 = vmatpush1.msra.mxu0 0.0
    %81 = vmatprep.subr.mxu0 0.0
    %82 = vmatpush1.msra.mxu0 0.0
    %83 = vmatprep.subr.mxu0 0.0
    %84 = vmatpush1.msra.mxu0 0.0
    %85 = vmatprep.subr.mxu0 0.0
    %86 = vmatpush1.msra.mxu0 0.0
    %87 = vmatprep.subr.mxu0 0.0
    %88 = vmatpush1.msra.mxu0 0.0
    %89 = vmatprep.subr.mxu0 0.0
    %90 = vmatpush1.msra.mxu0 0.0
    %91 = vmatprep.subr.mxu0 0.0
    %92 = vmatpush1.msra.mxu0 0.0
    %93 = vmatprep.subr.mxu0 0.0
    %94 = vmatpush1.msra.mxu0 0.0
    %95 = vmatprep.mubr.f32.mxu0 0.0
    %96 = vmatmul.mubr.f32.gmra.mrb[0].mxu0 %v29
    %v97 = vpop.f32.mrb[0].mxu0
    %v98 = vadd.f32 %v25, %v97
    %v99 = vpop.f32.mrb[0].mxu0
    %100 = vdwg.mxu0
    %v101 = vsub.f32 0.0, %v98
    %v102 = vmul.f32 %v101, 1.442695
    %v103 = vpow.pop %v102
    %v104 = vadd.f32 %v103, 1.0
    %v105 = vrcp.pop %v104
    %v106 = vlaneseq
    %v107 = vand.u32 %v106, 127
    %vm108 = vcmp.eq.s32.totalorder %v107, 1
    %v109 = vsel %vm108, %v105, %v98
    %vm110 = vcmask 9216
    %111 = vst.msk [vmem:[#allocation2] sm:$0x3] %vm110, %v109
    // Predicated region
    $region14: #{tpu_custom_call.1} parent=1 // pred_check
      _
    $region15: #{tpu_custom_call.1} parent=1 // pred_check_branch
      %113 = sbr.rel (0) target = $region17
    $region16: #{tpu_custom_call.1} parent=1 // pred_region
      %s115 = ssub.s32 32, 32
      %116 = vsyncadd [#allocation3], %s115
      %s118 = sshll.u32 [#allocation2], 4
      %s119 = int_to_ptr.vmem [resolvable:$true] %s118
      %121 = dma.vmem_to_hbm [thread:$0]  %s119, 32, %s3, [#allocation3]
    $region17: #{tpu_custom_call.1} parent=1 // pred_fallthru
      _
    // Predicated region
    $region18: #{tpu_custom_call.1} parent=1 // pred_check
      _
    $region19: #{tpu_custom_call.1} parent=1 // pred_check_branch
      %123 = sbr.rel (0) target = $region21
    $region20: #{tpu_custom_call.1} parent=1 // pred_region
      %124 = dma.done [#allocation3], 32
    $region21: #{tpu_custom_call.1} parent=1 // pred_fallthru
      _
    %125 = vsyncpa [#allocation3], 1

</llo_original>
